<compile_context>
chip_gen: v7x
topology: tpu7x:2x2x1
jax: 0.10.0
libtpu: 0.0.40
codegen_flags: <defaults>
</compile_context>

<pallas_src>
import math

import jax
import jax.numpy as jnp
from jax.experimental import pallas as pl
from jax.experimental.pallas import tpu as pltpu

_NUM_COPY_CHUNKS = 8                      # max concurrent DMAs for big copies
_MIN_CHUNK_BYTES = 4 * 1024 * 1024        # keep per-descriptor overhead (~0.35us) negligible


def _chunk_starts(dim, n):
    """Split `dim` leading rows into `n` contiguous (start, size) chunks (static)."""
    base, rem = divmod(dim, n)
    chunks = []
    off = 0
    for i in range(n):
        size = base + (1 if i < rem else 0)
        if size > 0:
            chunks.append((off, size))
        off += size
    return chunks


def _make_copy_kernel(chunks):
    """Build the DMA-copy kernel body + matching DMA-semaphore scratch spec."""
    if chunks is None:
        # Single whole-array HBM->HBM DMA; no VMEM staging, no vector stores
        # (important on v5e's single vst slot), TensorCore only waits.
        def kernel(x_hbm_ref, o_hbm_ref, sem):
            cp = pltpu.make_async_copy(x_hbm_ref, o_hbm_ref, sem)
            cp.start()
            cp.wait()

        return kernel, pltpu.SemaphoreType.DMA(())

    n = len(chunks)

    def kernel(x_hbm_ref, o_hbm_ref, sems):
        # Issue all chunk DMAs back-to-back so the HBM/DMA queues run
        # concurrently, then wait on all of them.
        cps = []
        for i, (start, size) in enumerate(chunks):
            cp = pltpu.make_async_copy(
                x_hbm_ref.at[pl.ds(start, size)],
                o_hbm_ref.at[pl.ds(start, size)],
                sems.at[i],
            )
            cp.start()
            cps.append(cp)
        for cp in cps:
            cp.wait()

    return kernel, pltpu.SemaphoreType.DMA((n,))


def identity(x: jax.Array) -> jax.Array:
    """Faithful nn.Identity.forward: returns x (trace-time elision, zero cost)."""
    return x


def identity_copy(x: jax.Array) -> jax.Array:
    """Identity with copy semantics: returns a fresh buffer equal to x via DMA."""
    if x.size == 0:
        return x  # nothing to move; don't issue a zero-sized DMA

    nbytes = int(x.size) * int(jnp.dtype(x.dtype).itemsize)

    # Chunk only when it can actually help: big tensor and a splittable
    # leading dim. The 8 KiB test tensor takes the single-DMA path.
    n_chunks = 1
    if x.ndim >= 1 and x.shape[0] > 1 and nbytes >= 2 * _MIN_CHUNK_BYTES:
        n_chunks = int(min(_NUM_COPY_CHUNKS, x.shape[0],
                           max(1, nbytes // _MIN_CHUNK_BYTES)))
    chunks = _chunk_starts(x.shape[0], n_chunks) if n_chunks > 1 else None

    kernel, sem_spec = _make_copy_kernel(chunks)

    return pl.pallas_call(
        kernel,
        out_shape=jax.ShapeDtypeStruct(x.shape, x.dtype),
        in_specs=[pl.BlockSpec(memory_space=pl.ANY)],   # raw HBM ref, no auto-DMA
        out_specs=pl.BlockSpec(memory_space=pl.ANY),    # raw HBM ref, no auto-DMA
        scratch_shapes=[sem_spec],
        cost_estimate=pl.CostEstimate(
            flops=0, transcendentals=0, bytes_accessed=2 * nbytes),
    )(x)


def identity_donated(x: jax.Array) -> jax.Array:
    """Zero-copy identity when the caller can donate x (input_output_aliases).

    The output IS the input buffer; no HBM bytes move. Use only when x's
    buffer may be donated (e.g. under jit with donate_argnums); otherwise XLA
    inserts a defensive copy and this degenerates to identity_copy.
    """
    def kernel(x_hbm_ref, o_hbm_ref):
        del x_hbm_ref
        pltpu.touch(o_hbm_ref)  # keep the aliased output live; no data movement

    return pl.pallas_call(
        kernel,
        out_shape=jax.ShapeDtypeStruct(x.shape, x.dtype),
        in_specs=[pl.BlockSpec(memory_space=pl.ANY)],
        out_specs=pl.BlockSpec(memory_space=pl.ANY),
        input_output_aliases={0: 0},
        cost_estimate=pl.CostEstimate(flops=0, transcendentals=0, bytes_accessed=0),
    )(x)


if __name__ == "__main__":
    key = jax.random.PRNGKey(0)
    # Small NCHW input, consistent with what slr_network would feed through Identity.
    x = jax.random.normal(key, (2, 4, 16, 16), dtype=jnp.float32)

    # Default path: trace-time elision (matches PyTorch Identity's aliasing).
    y_alias = identity(x)
    assert y_alias is x

    # Explicit-copy path: exercise the Pallas DMA kernel once.
    y = identity_copy(x)
    y = jax.block_until_ready(y)

    assert y.shape == x.shape
    assert y.dtype == x.dtype
    assert bool(jnp.all(y == x))

    print("KERNEL_OK")
</pallas_src>

<mosaic_0001>
module attributes {stable_mosaic.version = 11 : i64} {
  func.func @kernel(%arg0: memref<2x4x16x16xf32, #tpu.memory_space<any>>, %arg1: memref<2x4x16x16xf32, #tpu.memory_space<any>>, %arg2: memref<!tpu.dma_semaphore, #tpu.memory_space<semaphore_mem>>) attributes {dimension_semantics = [], scalar_prefetch = 0 : i64, scratch_operands = 1 : i64, tpu.core_type = #tpu.core_type<tc>} {
    tpu.enqueue_dma source(%arg0 : memref<2x4x16x16xf32, #tpu.memory_space<any>>) target(%arg1 : memref<2x4x16x16xf32, #tpu.memory_space<any>>) target_semaphore(%arg2 : memref<!tpu.dma_semaphore, #tpu.memory_space<semaphore_mem>>)
    tpu.wait_dma2 semaphore(%arg2 : memref<!tpu.dma_semaphore, #tpu.memory_space<semaphore_mem>>) src(%arg0 : memref<2x4x16x16xf32, #tpu.memory_space<any>>) dst(%arg1 : memref<2x4x16x16xf32, #tpu.memory_space<any>>)
    return
  }
}

</mosaic_0001>

<llo_original>
// kernel: tpu_custom_call.1
$region0: #{tpu_custom_call.1}
  #allocation0 [shape = 'u32[]', space=smem, size = 0x4, offset = 0x4, fixed_abs, tag = 'smem constant byte address 0x4 - core index']
  #allocation1 [shape = 'u32[144,128]{1,0:T(1,128)}', space=vmem, size = 0x12000, scoped, tag = 'internal scratch']
  #allocation2 [shape = 's32[1]{0}', space=sflag, size = 0x4, scoped, tag = 'scratch operand']
  #allocation3 [shape = 's32[]', space=sflag, size = 0x4, offset = 0, fixed_abs, tag = 'sflag constant byte address 0x0 - dummy sync flag']
  #allocation4 [shape = 'u32[0]{0}', space=smem, size = 0, offset = 0, fixed_abs, tag = 'smem constant byte address 0x0 - null']
  %s0 = inlined_call_operand.hbm [shape: f32[2,4,16,16], index: 0, kind: input, shape index: {}]
  %s1 = inlined_call_operand.hbm [shape: f32[2,4,16,16], index: 1, kind: output, shape index: {}]
  %s2 = sld [smem:[#allocation0]]
  $region2: #{tpu_custom_call.1} parent=0
    _
  %s4 = ssub.s32 1, %s2
  %s5 = scalar_select 0, %s4, %s2
  %s7 = sshll.u32 1, 14
  %s8 = sxor.u32 4294967295, %s7
  %s11 = sshll.u32 3, 24
  %s12 = sxor.u32 4294967295, %s11
  %s13 = sand.u32 0, %s12
  %s15 = sor.u32 %s13, 0
  %18 = dma.general %s0, 2048, %s1, [#allocation2], [#allocation3], [#allocation4], %s15, 0
  %s19 = smul.u32 2, 4
  %s20 = smul.u32 %s19, 16
  %s21 = smul.u32 %s20, 1
  %s22 = sshll.u32 %s21, 4
  %23 = dma.done [#allocation2], %s22
  %24 = vsyncmov [#allocation2]
  %s25 = vpop.sfrf %24
  %p26 = scmp.eq.s32.totalorder %s25, 0
  %p27 = pneg %p26
  %29 = shalt.err (%p27)

</llo_original>
